<compile_context>
chip_gen: v7x
topology: tpu7x:2x2x1
jax: 0.10.0
libtpu: 0.0.40
codegen_flags: <defaults>
</compile_context>

<pallas_src>
import jax
import jax.numpy as jnp
from jax.experimental import pallas as pl
from jax.experimental.pallas import tpu as pltpu

# ---- problem constants (from the PyTorch script) ---------------------------
I = 40
DIM_U1 = 20                        # len(np.arange(0, 40, 2))
DIM_U2 = 20                        # len(np.arange(1, 40, 2))
DIM_Z = 6                          # dim_z_unit
OUT1_DIM = 1 + DIM_Z * 3           # 19
OUT2_DIM = DIM_Z + 5 * DIM_Z ** 2  # 186
TOTAL_OUT = OUT1_DIM + OUT2_DIM    # 205
OUT_PAD = 256                      # lane-dense padded output width (multiple of 128)
ZU = DIM_Z * DIM_U2                # 120

TM_MAX = 2048                      # max row tile (review: 1024-2048)


def _round_up(n, m):
    return ((n + m - 1) // m) * m


def _choose_tiling(n_rows, tm_max=TM_MAX, min_steps=2):
    """Pick (tm, padded_N).

    Always an even number of >= `min_steps` grid steps so v7x's two TensorCores
    both get work on the "parallel" axis; tm as large as possible otherwise.
    For even batches (N divisible by 8 and by the step count) padded_N == N,
    so no row padding and no out[:N] slice is needed.
    """
    n8 = _round_up(max(n_rows, 1), 8)
    steps = max(min_steps, -(-n8 // tm_max))
    steps += steps % 2                       # even step count for 2-TC balance
    tm = _round_up(-(-n8 // steps), 8)
    return tm, steps * tm


# ---- Pallas kernel: fused 4-layer MLP (both nets, block-diagonal weights) ---
def _fused_mlp_kernel(x_ref, w1, b1, w2, b2, w3, b3, w4, b4, o_ref):
    h = x_ref[...]
    h = jnp.maximum(jnp.dot(h, w1[...], preferred_element_type=jnp.float32) + b1[...], 0.0)
    h = jnp.maximum(jnp.dot(h, w2[...], preferred_element_type=jnp.float32) + b2[...], 0.0)
    h = jnp.maximum(jnp.dot(h, w3[...], preferred_element_type=jnp.float32) + b3[...], 0.0)
    o_ref[...] = (jnp.dot(h, w4[...], preferred_element_type=jnp.float32) + b4[...]).astype(o_ref.dtype)


def run_fused_mlp(x_flat, fused_params):
    """x_flat: (N, 3) f32 -> (N, OUT_PAD) f32 (cols 0:19 = net1, 19:205 = net2)."""
    N = x_flat.shape[0]
    tm, padded_N = _choose_tiling(N)
    if padded_N != N:
        x_flat = jnp.pad(x_flat, ((0, padded_N - N), (0, 0)))

    def full_spec(a):
        nd = a.ndim
        return pl.BlockSpec(a.shape, lambda i, _nd=nd: (0,) * _nd)

    w_specs = [full_spec(p) for p in fused_params]

    out = pl.pallas_call(
        _fused_mlp_kernel,
        out_shape=jax.ShapeDtypeStruct((padded_N, OUT_PAD), jnp.float32),
        grid_spec=pltpu.PrefetchScalarGridSpec(
            num_scalar_prefetch=0,
            grid=(padded_N // tm,),
            in_specs=[pl.BlockSpec((tm, 3), lambda i: (i, 0))] + w_specs,
            out_specs=pl.BlockSpec((tm, OUT_PAD), lambda i: (i, 0)),
        ),
        compiler_params=pltpu.CompilerParams(dimension_semantics=("parallel",)),
    )(x_flat, *fused_params)
    return out if padded_N == N else out[:N]


# ---- deterministic parameter init (mimics torch.nn.Linear U(-1/sqrt(fan_in), .)) ----
def init_linear(key, fan_in, fan_out):
    kw, kb = jax.random.split(key)
    bound = 1.0 / float(fan_in) ** 0.5
    w = jax.random.uniform(kw, (fan_in, fan_out), jnp.float32, -bound, bound)
    b = jax.random.uniform(kb, (1, fan_out), jnp.float32, -bound, bound)
    return w, b


def init_mlp(key, dims):
    keys = jax.random.split(key, len(dims) - 1)
    params = []
    for k, fi, fo in zip(keys, dims[:-1], dims[1:]):
        w, b = init_linear(k, fi, fo)
        params += [w, b]
    return params


# ---- fuse the two per-unit networks into one block-diagonal MLP -------------
def _block_diag(a, b):
    za = jnp.zeros((a.shape[0], b.shape[1]), a.dtype)
    zb = jnp.zeros((b.shape[0], a.shape[1]), b.dtype)
    return jnp.concatenate(
        [jnp.concatenate([a, za], axis=1), jnp.concatenate([zb, b], axis=1)], axis=0
    )


def fuse_params(params1, params2):
    """Build fused weights: layer1 shares the 3 inputs (concat), layers 2-4 block-diag.
    Final layer columns are zero-padded from 205 to OUT_PAD=256 for lane-dense stores."""
    w1a, b1a, w2a, b2a, w3a, b3a, w4a, b4a = params1
    w1b, b1b, w2b, b2b, w3b, b3b, w4b, b4b = params2
    w1 = jnp.concatenate([w1a, w1b], axis=1)          # (3, 32)
    b1 = jnp.concatenate([b1a, b1b], axis=1)          # (1, 32)
    w2 = _block_diag(w2a, w2b)                        # (32, 64)
    b2 = jnp.concatenate([b2a, b2b], axis=1)          # (1, 64)
    w3 = _block_diag(w3a, w3b)                        # (64, 32)
    b3 = jnp.concatenate([b3a, b3b], axis=1)          # (1, 32)
    w4 = _block_diag(w4a, w4b)                        # (32, 205)
    b4 = jnp.concatenate([b4a, b4b], axis=1)          # (1, 205)
    pad = OUT_PAD - w4.shape[1]
    w4 = jnp.pad(w4, ((0, 0), (0, pad)))              # (32, 256)
    b4 = jnp.pad(b4, ((0, 0), (0, pad)))              # (1, 256)
    return [w1, b1, w2, b2, w3, b3, w4, b4]


# ---- full CGN forward -------------------------------------------------------
def cgn_forward(x, fused_params):
    B = x.shape[0]

    # 3-neighborhood taps via rolls (no advanced-index gather)
    x_prev = jnp.roll(x, 1, axis=1)
    x_next = jnp.roll(x, -1, axis=1)
    x_flat = jnp.stack([x_prev, x, x_next], axis=-1).reshape(B * DIM_U1, 3)

    out = run_fused_mlp(x_flat, fused_params).reshape(B, DIM_U1, OUT_PAD)

    f1 = out[:, :, :1]                                             # (B, 20, 1)

    # g1 banded placement: the band offset for unit u is 6*(u-1), so 20 static
    # rolls + one concatenate (gather-free; fuses to plain copies on TPU).
    band1 = jnp.pad(out[:, :, 1:OUT1_DIM], ((0, 0), (0, 0), (0, ZU - 3 * DIM_Z)))
    g1 = jnp.concatenate(
        [jnp.roll(band1[:, u:u + 1], DIM_Z * (u - 1), axis=-1) for u in range(DIM_U1)],
        axis=1)                                                    # (B, 20, 120)

    f2 = out[:, :, OUT1_DIM:OUT1_DIM + DIM_Z].reshape(B, ZU, 1)    # (B, 120, 1)

    # g2 banded placement: all 6 rows of unit u share the offset 6*(u-2).
    band2 = out[:, :, OUT1_DIM + DIM_Z:TOTAL_OUT].reshape(B, DIM_U1, DIM_Z, 5 * DIM_Z)
    band2 = jnp.pad(band2, ((0, 0), (0, 0), (0, 0), (0, ZU - 5 * DIM_Z)))
    g2 = jnp.concatenate(
        [jnp.roll(band2[:, u:u + 1], DIM_Z * (u - 2), axis=-1) for u in range(DIM_U1)],
        axis=1).reshape(B, ZU, ZU)                                 # (B, 120, 120)

    # TODO(synk): longer term, fold the band placement into the kernel itself by
    # adding a unit-index grid axis and per-unit (banded, zero-filled) final-layer
    # weights, so f1/g1/f2/g2 are written directly and the (N,256) intermediate is
    # never materialized.
    return [f1, g1, f2, g2]


# ---- pure-JAX reference (literal translation of the torch forward) ----------
def _mlp_ref(x, params):
    h = x
    for i in range(0, len(params) - 2, 2):
        h = jnp.maximum(
            jnp.dot(h, params[i], precision=jax.lax.Precision.HIGHEST) + params[i + 1], 0.0
        )
    return jnp.dot(h, params[-2], precision=jax.lax.Precision.HIGHEST) + params[-1]


def cgn_reference(x, params1, params2):
    B = x.shape[0]
    idx = jnp.array(
        [[(i - 1) % DIM_U1, i, (i + 1) % DIM_U1] for i in range(DIM_U1)], jnp.int32
    )
    x_local = x[:, idx]                                  # (B, 20, 3)
    out1 = _mlp_ref(x_local, params1)
    out2 = _mlp_ref(x_local, params2)

    f1 = out1[:, :, :1]
    mask1_g1 = jnp.arange(DIM_U1)[:, None]
    mask2_g1 = jnp.stack(
        [(jnp.arange(3 * DIM_Z) + i * DIM_Z) % ZU for i in range(-1, DIM_U1 - 1)]
    )
    g1 = jnp.zeros((B, DIM_U1, ZU), jnp.float32).at[:, mask1_g1, mask2_g1].set(out1[:, :, 1:])

    f2 = out2[:, :, :DIM_Z].reshape(B, -1, 1)
    mask1_g2 = jnp.arange(ZU)[:, None]
    mask2_g2 = jnp.concatenate(
        [(jnp.tile(jnp.arange(5 * DIM_Z), (DIM_Z, 1)) + i * DIM_Z) % ZU
         for i in range(-2, DIM_U2 - 2)]
    )
    vals2 = out2[:, :, DIM_Z:].reshape(B, ZU, 5 * DIM_Z)
    g2 = jnp.zeros((B, ZU, ZU), jnp.float32).at[:, mask1_g2, mask2_g2].set(vals2)
    return [f1, g1, f2, g2]


if __name__ == "__main__":
    key = jax.random.PRNGKey(0)
    k_x, k_p1, k_p2 = jax.random.split(key, 3)

    params1 = init_mlp(k_p1, (3, 16, 32, 16, OUT1_DIM))
    params2 = init_mlp(k_p2, (3, 16, 32, 16, OUT2_DIM))
    fused_params = fuse_params(params1, params2)  # one-time fusion ("__init__" cost)

    fwd = jax.jit(cgn_forward)

    # B=4: even batch (zero row padding, 2 grid steps); B=5: exercises padding path.
    for B in (4, 5):
        xb = jax.random.normal(jax.random.fold_in(k_x, B), (B, DIM_U1), dtype=jnp.float32)
        f1, g1, f2, g2 = fwd(xb, fused_params)
        jax.block_until_ready((f1, g1, f2, g2))

        assert f1.shape == (B, DIM_U1, 1)
        assert g1.shape == (B, DIM_U1, ZU)
        assert f2.shape == (B, ZU, 1)
        assert g2.shape == (B, ZU, ZU)

        ref = cgn_reference(xb, params1, params2)
        for got, want, name in zip((f1, g1, f2, g2), ref, ("f1", "g1", "f2", "g2")):
            if not jnp.allclose(got, want, rtol=1e-3, atol=1e-4):
                raise AssertionError(f"CGN output mismatch vs reference: {name} (B={B})")

    print("KERNEL_OK")
</pallas_src>

<mosaic_0001>
module attributes {stable_mosaic.version = 11 : i64} {
  func.func @_fused_mlp_kernel(%arg0: i32, %arg1: memref<40x3xf32, #tpu.memory_space<vmem>>, %arg2: memref<3x32xf32, #tpu.memory_space<vmem>>, %arg3: memref<1x32xf32, #tpu.memory_space<vmem>>, %arg4: memref<32x64xf32, #tpu.memory_space<vmem>>, %arg5: memref<1x64xf32, #tpu.memory_space<vmem>>, %arg6: memref<64x32xf32, #tpu.memory_space<vmem>>, %arg7: memref<1x32xf32, #tpu.memory_space<vmem>>, %arg8: memref<32x256xf32, #tpu.memory_space<vmem>>, %arg9: memref<1x256xf32, #tpu.memory_space<vmem>>, %arg10: memref<40x256xf32, #tpu.memory_space<vmem>>) attributes {dimension_semantics = [#tpu.dimension_semantics<parallel>], iteration_bounds = array<i64: 2>, scalar_prefetch = 0 : i64, scratch_operands = 0 : i64, tpu.core_type = #tpu.core_type<tc>, window_params = [{transform_indices = @transform_0, window_bounds = array<i64: 40, 3>}, {pipeline_mode = #tpu.pipeline_mode<synchronous>, transform_indices = @transform_1, window_bounds = array<i64: 3, 32>}, {pipeline_mode = #tpu.pipeline_mode<synchronous>, transform_indices = @transform_2, window_bounds = array<i64: 1, 32>}, {pipeline_mode = #tpu.pipeline_mode<synchronous>, transform_indices = @transform_3, window_bounds = array<i64: 32, 64>}, {pipeline_mode = #tpu.pipeline_mode<synchronous>, transform_indices = @transform_4, window_bounds = array<i64: 1, 64>}, {pipeline_mode = #tpu.pipeline_mode<synchronous>, transform_indices = @transform_5, window_bounds = array<i64: 64, 32>}, {pipeline_mode = #tpu.pipeline_mode<synchronous>, transform_indices = @transform_6, window_bounds = array<i64: 1, 32>}, {pipeline_mode = #tpu.pipeline_mode<synchronous>, transform_indices = @transform_7, window_bounds = array<i64: 32, 256>}, {pipeline_mode = #tpu.pipeline_mode<synchronous>, transform_indices = @transform_8, window_bounds = array<i64: 1, 256>}, {transform_indices = @transform_9, window_bounds = array<i64: 40, 256>}]} {
    %c0 = arith.constant 0 : index
    %c0_0 = arith.constant 0 : index
    %0 = vector.load %arg1[%c0, %c0_0] : memref<40x3xf32, #tpu.memory_space<vmem>>, vector<40x3xf32>
    %c0_1 = arith.constant 0 : index
    %c0_2 = arith.constant 0 : index
    %1 = vector.load %arg2[%c0_1, %c0_2] : memref<3x32xf32, #tpu.memory_space<vmem>>, vector<3x32xf32>
    %cst = arith.constant dense<0.000000e+00> : vector<40x32xf32>
    %2 = tpu.matmul %0, %1, %cst {dimension_numbers = #tpu.dot_dimension_numbers<[1], [0], [0], [1], [0, 0, 1, 1], [], []>} : vector<40x3xf32>, vector<3x32xf32>, vector<40x32xf32> -> vector<40x32xf32>
    %c0_3 = arith.constant 0 : index
    %c0_4 = arith.constant 0 : index
    %3 = vector.load %arg3[%c0_3, %c0_4] : memref<1x32xf32, #tpu.memory_space<vmem>>, vector<1x32xf32>
    %4 = vector.broadcast %3 : vector<1x32xf32> to vector<40x32xf32>
    %5 = arith.addf %2, %4 : vector<40x32xf32>
    %cst_5 = arith.constant 0.000000e+00 : f32
    %6 = vector.broadcast %cst_5 : f32 to vector<40x32xf32>
    %7 = arith.maximumf %5, %6 : vector<40x32xf32>
    %c0_6 = arith.constant 0 : index
    %c0_7 = arith.constant 0 : index
    %8 = vector.load %arg4[%c0_6, %c0_7] : memref<32x64xf32, #tpu.memory_space<vmem>>, vector<32x64xf32>
    %cst_8 = arith.constant dense<0.000000e+00> : vector<40x64xf32>
    %9 = tpu.matmul %7, %8, %cst_8 {dimension_numbers = #tpu.dot_dimension_numbers<[1], [0], [0], [1], [0, 0, 1, 1], [], []>} : vector<40x32xf32>, vector<32x64xf32>, vector<40x64xf32> -> vector<40x64xf32>
    %c0_9 = arith.constant 0 : index
    %c0_10 = arith.constant 0 : index
    %10 = vector.load %arg5[%c0_9, %c0_10] : memref<1x64xf32, #tpu.memory_space<vmem>>, vector<1x64xf32>
    %11 = vector.broadcast %10 : vector<1x64xf32> to vector<40x64xf32>
    %12 = arith.addf %9, %11 : vector<40x64xf32>
    %cst_11 = arith.constant 0.000000e+00 : f32
    %13 = vector.broadcast %cst_11 : f32 to vector<40x64xf32>
    %14 = arith.maximumf %12, %13 : vector<40x64xf32>
    %c0_12 = arith.constant 0 : index
    %c0_13 = arith.constant 0 : index
    %15 = vector.load %arg6[%c0_12, %c0_13] : memref<64x32xf32, #tpu.memory_space<vmem>>, vector<64x32xf32>
    %cst_14 = arith.constant dense<0.000000e+00> : vector<40x32xf32>
    %16 = tpu.matmul %14, %15, %cst_14 {dimension_numbers = #tpu.dot_dimension_numbers<[1], [0], [0], [1], [0, 0, 1, 1], [], []>} : vector<40x64xf32>, vector<64x32xf32>, vector<40x32xf32> -> vector<40x32xf32>
    %c0_15 = arith.constant 0 : index
    %c0_16 = arith.constant 0 : index
    %17 = vector.load %arg7[%c0_15, %c0_16] : memref<1x32xf32, #tpu.memory_space<vmem>>, vector<1x32xf32>
    %18 = vector.broadcast %17 : vector<1x32xf32> to vector<40x32xf32>
    %19 = arith.addf %16, %18 : vector<40x32xf32>
    %cst_17 = arith.constant 0.000000e+00 : f32
    %20 = vector.broadcast %cst_17 : f32 to vector<40x32xf32>
    %21 = arith.maximumf %19, %20 : vector<40x32xf32>
    %c0_18 = arith.constant 0 : index
    %c0_19 = arith.constant 0 : index
    %22 = vector.load %arg8[%c0_18, %c0_19] : memref<32x256xf32, #tpu.memory_space<vmem>>, vector<32x256xf32>
    %cst_20 = arith.constant dense<0.000000e+00> : vector<40x256xf32>
    %23 = tpu.matmul %21, %22, %cst_20 {dimension_numbers = #tpu.dot_dimension_numbers<[1], [0], [0], [1], [0, 0, 1, 1], [], []>} : vector<40x32xf32>, vector<32x256xf32>, vector<40x256xf32> -> vector<40x256xf32>
    %c0_21 = arith.constant 0 : index
    %c0_22 = arith.constant 0 : index
    %24 = vector.load %arg9[%c0_21, %c0_22] : memref<1x256xf32, #tpu.memory_space<vmem>>, vector<1x256xf32>
    %25 = vector.broadcast %24 : vector<1x256xf32> to vector<40x256xf32>
    %26 = arith.addf %23, %25 : vector<40x256xf32>
    %c0_23 = arith.constant 0 : index
    %c0_24 = arith.constant 0 : index
    %27 = vector.load %arg10[%c0_23, %c0_24] : memref<40x256xf32, #tpu.memory_space<vmem>>, vector<40x256xf32>
    tpu.vector_store %arg10[%c0_23, %c0_24], %26 {strides = array<i32>} : memref<40x256xf32, #tpu.memory_space<vmem>>, vector<40x256xf32>,
    return
  }
  func.func @transform_0(%arg0: i32) -> (i32, i32) {
    %c0_i32 = arith.constant 0 : i32
    %c0_i32_0 = arith.constant 0 : i32
    return %arg0, %c0_i32 : i32, i32
  }
  func.func @transform_1(%arg0: i32) -> (i32, i32) {
    %c0_i32 = arith.constant 0 : i32
    %c0_i32_0 = arith.constant 0 : i32
    %c0_i32_1 = arith.constant 0 : i32
    return %c0_i32, %c0_i32_0 : i32, i32
  }
  func.func @transform_2(%arg0: i32) -> (i32, i32) {
    %c0_i32 = arith.constant 0 : i32
    %c0_i32_0 = arith.constant 0 : i32
    %c0_i32_1 = arith.constant 0 : i32
    return %c0_i32, %c0_i32_0 : i32, i32
  }
  func.func @transform_3(%arg0: i32) -> (i32, i32) {
    %c0_i32 = arith.constant 0 : i32
    %c0_i32_0 = arith.constant 0 : i32
    %c0_i32_1 = arith.constant 0 : i32
    return %c0_i32, %c0_i32_0 : i32, i32
  }
  func.func @transform_4(%arg0: i32) -> (i32, i32) {
    %c0_i32 = arith.constant 0 : i32
    %c0_i32_0 = arith.constant 0 : i32
    %c0_i32_1 = arith.constant 0 : i32
    return %c0_i32, %c0_i32_0 : i32, i32
  }
  func.func @transform_5(%arg0: i32) -> (i32, i32) {
    %c0_i32 = arith.constant 0 : i32
    %c0_i32_0 = arith.constant 0 : i32
    %c0_i32_1 = arith.constant 0 : i32
    return %c0_i32, %c0_i32_0 : i32, i32
  }
  func.func @transform_6(%arg0: i32) -> (i32, i32) {
    %c0_i32 = arith.constant 0 : i32
    %c0_i32_0 = arith.constant 0 : i32
    %c0_i32_1 = arith.constant 0 : i32
    return %c0_i32, %c0_i32_0 : i32, i32
  }
  func.func @transform_7(%arg0: i32) -> (i32, i32) {
    %c0_i32 = arith.constant 0 : i32
    %c0_i32_0 = arith.constant 0 : i32
    %c0_i32_1 = arith.constant 0 : i32
    return %c0_i32, %c0_i32_0 : i32, i32
  }
  func.func @transform_8(%arg0: i32) -> (i32, i32) {
    %c0_i32 = arith.constant 0 : i32
    %c0_i32_0 = arith.constant 0 : i32
    %c0_i32_1 = arith.constant 0 : i32
    return %c0_i32, %c0_i32_0 : i32, i32
  }
  func.func @transform_9(%arg0: i32) -> (i32, i32) {
    %c0_i32 = arith.constant 0 : i32
    %c0_i32_0 = arith.constant 0 : i32
    return %arg0, %c0_i32 : i32, i32
  }
}

</mosaic_0001>

<llo_original>
// kernel: cgn_forward.1
$region0: #{cgn_forward.1}
  #allocation0 [shape = 'u32[]', space=smem, size = 0x4, offset = 0x4, fixed_abs, tag = 'smem constant byte address 0x4 - core index']
  #allocation1 [shape = 'u32[144,128]{1,0:T(1,128)}', space=vmem, size = 0x12000, scoped, tag = 'internal scratch']
  %s0 = inlined_call_operand.vmem [shape: f32[80,3], index: 0, kind: input, shape index: {}]
  %s1 = inlined_call_operand.vmem [shape: f32[3,32], index: 1, kind: input, shape index: {}]
  %s2 = inlined_call_operand.vmem [shape: f32[1,32], index: 2, kind: input, shape index: {}]
  %s3 = inlined_call_operand.vmem [shape: f32[32,64], index: 3, kind: input, shape index: {}]
  %s4 = inlined_call_operand.vmem [shape: f32[1,64], index: 4, kind: input, shape index: {}]
  %s5 = inlined_call_operand.vmem [shape: f32[64,32], index: 5, kind: input, shape index: {}]
  %s6 = inlined_call_operand.vmem [shape: f32[1,32], index: 6, kind: input, shape index: {}]
  %s7 = inlined_call_operand.vmem [shape: f32[32,256], index: 7, kind: input, shape index: {}]
  %s8 = inlined_call_operand.vmem [shape: f32[1,256], index: 8, kind: input, shape index: {}]
  %s9 = inlined_call_operand.vmem [shape: f32[80,256], index: 9, kind: output, shape index: {}]
  %s10 = sld [smem:[#allocation0]]
  $region69: #{cgn_forward.1} parent=0
    _
  %s12 = ssub.s32 1, %s10
  %s13 = scalar_select 0, %s12, %s10
  loop: start=0, step=1, limit=4
  $region2: #{cgn_forward.1} parent=0 // loop_pre_header
    _
  $region3: #{cgn_forward.1} parent=0 // loop_header
    %s15 = sphi 0, %s19
    %p16 = scmp.ge.s32.totalorder %s15, 4
    %s25 = sphi 0, %s27
    %s28 = sphi 0, %s25
    %s29 = sphi 0, %s28
    %s45 = sphi 0, %s29
    %s49 = sphi 0, %s49
    %s51 = sphi 0, %s49
    %s52 = sphi 0, %s51
    %s66 = sphi 0, %s52
    %s70 = sphi 0, %s70
    %s72 = sphi 0, %s70
    %s73 = sphi 0, %s72
    %s87 = sphi 0, %s73
    %s91 = sphi 0, %s91
    %s93 = sphi 0, %s91
    %s94 = sphi 0, %s93
    %s108 = sphi 0, %s94
    %s112 = sphi 0, %s112
    %s114 = sphi 0, %s112
    %s115 = sphi 0, %s114
    %s129 = sphi 0, %s115
    %s133 = sphi 0, %s133
    %s135 = sphi 0, %s133
    %s136 = sphi 0, %s135
    %s150 = sphi 0, %s136
    %s154 = sphi 0, %s154
    %s156 = sphi 0, %s154
    %s157 = sphi 0, %s156
    %s171 = sphi 0, %s157
    %s175 = sphi 0, %s175
    %s177 = sphi 0, %s175
    %s178 = sphi 0, %s177
    %s192 = sphi 0, %s178
    %s196 = sphi 0, %s196
    %s198 = sphi 0, %s196
    %s199 = sphi 0, %s198
    %s213 = sphi 0, %s199
    %s219 = sphi 0, %s221
    %s222 = sphi 0, %s219
    %s223 = sphi 0, %s222
    %s239 = sphi 0, %s223
  $region4: #{cgn_forward.1} parent=0 // loop_header_branch
    %18 = sbr.rel (%p16) target = $region8
  $region5: #{cgn_forward.1} parent=0 // loop_body
    %s20 = ssub.s32 %s15, 1
    %s21 = ssub.s32 %s15, 2
    %s22 = sadd.s32 %s15, 1
    %s23 = ssub.s32 %s15, %s22
    %p24 = scmp.eq.s32.totalorder %s23, 0
    %s26 = sadd.s32 %s25, 1
    %s27 = scalar_select %p24, %s25, %s26
    %p30 = pneg %p24
    %p31 = scmp.eq.s32.totalorder %s15, 1
    %p32 = por %p30, %p31
    %p33 = scmp.ne.s32.totalorder %s25, %s28
    %p34 = scmp.eq.s32.totalorder %s15, 0
    %p35 = por %p33, %p34
    %p36 = scmp.ne.s32.totalorder %s25, %s28
    %p37 = scmp.eq.s32.totalorder %s20, 1
    %p38 = por %p36, %p37
    %p39 = scmp.ne.s32.totalorder %s28, %s29
    %p40 = scmp.eq.s32.totalorder %s20, 0
    %p41 = por %p39, %p40
    %p42 = scmp.ne.s32.totalorder %s28, %s29
    %p43 = scmp.eq.s32.totalorder %s21, 1
    %p44 = por %p42, %p43
    %p46 = scmp.ne.s32.totalorder %s29, %s45
    %p47 = scmp.eq.s32.totalorder %s21, 0
    %p48 = por %p46, %p47
    %s50 = sadd.s32 %s49, 1
    %p53 = scmp.eq.s32.totalorder %s15, 1
    %p54 = scmp.ne.s32.totalorder %s49, %s51
    %p55 = scmp.eq.s32.totalorder %s15, 0
    %p56 = por %p54, %p55
    %p57 = scmp.ne.s32.totalorder %s49, %s51
    %p58 = scmp.eq.s32.totalorder %s20, 1
    %p59 = por %p57, %p58
    %p60 = scmp.ne.s32.totalorder %s51, %s52
    %p61 = scmp.eq.s32.totalorder %s20, 0
    %p62 = por %p60, %p61
    %p63 = scmp.ne.s32.totalorder %s51, %s52
    %p64 = scmp.eq.s32.totalorder %s21, 1
    %p65 = por %p63, %p64
    %p67 = scmp.ne.s32.totalorder %s52, %s66
    %p68 = scmp.eq.s32.totalorder %s21, 0
    %p69 = por %p67, %p68
    %s71 = sadd.s32 %s70, 1
    %p74 = scmp.eq.s32.totalorder %s15, 1
    %p75 = scmp.ne.s32.totalorder %s70, %s72
    %p76 = scmp.eq.s32.totalorder %s15, 0
    %p77 = por %p75, %p76
    %p78 = scmp.ne.s32.totalorder %s70, %s72
    %p79 = scmp.eq.s32.totalorder %s20, 1
    %p80 = por %p78, %p79
    %p81 = scmp.ne.s32.totalorder %s72, %s73
    %p82 = scmp.eq.s32.totalorder %s20, 0
    %p83 = por %p81, %p82
    %p84 = scmp.ne.s32.totalorder %s72, %s73
    %p85 = scmp.eq.s32.totalorder %s21, 1
    %p86 = por %p84, %p85
    %p88 = scmp.ne.s32.totalorder %s73, %s87
    %p89 = scmp.eq.s32.totalorder %s21, 0
    %p90 = por %p88, %p89
    %s92 = sadd.s32 %s91, 1
    %p95 = scmp.eq.s32.totalorder %s15, 1
    %p96 = scmp.ne.s32.totalorder %s91, %s93
    %p97 = scmp.eq.s32.totalorder %s15, 0
    %p98 = por %p96, %p97
    %p99 = scmp.ne.s32.totalorder %s91, %s93
    %p100 = scmp.eq.s32.totalorder %s20, 1
    %p101 = por %p99, %p100
    %p102 = scmp.ne.s32.totalorder %s93, %s94
    %p103 = scmp.eq.s32.totalorder %s20, 0
    %p104 = por %p102, %p103
    %p105 = scmp.ne.s32.totalorder %s93, %s94
    %p106 = scmp.eq.s32.totalorder %s21, 1
    %p107 = por %p105, %p106
    %p109 = scmp.ne.s32.totalorder %s94, %s108
    %p110 = scmp.eq.s32.totalorder %s21, 0
    %p111 = por %p109, %p110
    %s113 = sadd.s32 %s112, 1
    %p116 = scmp.eq.s32.totalorder %s15, 1
    %p117 = scmp.ne.s32.totalorder %s112, %s114
    %p118 = scmp.eq.s32.totalorder %s15, 0
    %p119 = por %p117, %p118
    %p120 = scmp.ne.s32.totalorder %s112, %s114
    %p121 = scmp.eq.s32.totalorder %s20, 1
    %p122 = por %p120, %p121
    %p123 = scmp.ne.s32.totalorder %s114, %s115
    %p124 = scmp.eq.s32.totalorder %s20, 0
    %p125 = por %p123, %p124
    %p126 = scmp.ne.s32.totalorder %s114, %s115
    %p127 = scmp.eq.s32.totalorder %s21, 1
    %p128 = por %p126, %p127
    %p130 = scmp.ne.s32.totalorder %s115, %s129
    %p131 = scmp.eq.s32.totalorder %s21, 0
    %p132 = por %p130, %p131
    %s134 = sadd.s32 %s133, 1
    %p137 = scmp.eq.s32.totalorder %s15, 1
    %p138 = scmp.ne.s32.totalorder %s133, %s135
    %p139 = scmp.eq.s32.totalorder %s15, 0
    %p140 = por %p138, %p139
    %p141 = scmp.ne.s32.totalorder %s133, %s135
    %p142 = scmp.eq.s32.totalorder %s20, 1
    %p143 = por %p141, %p142
    %p144 = scmp.ne.s32.totalorder %s135, %s136
    %p145 = scmp.eq.s32.totalorder %s20, 0
    %p146 = por %p144, %p145
    %p147 = scmp.ne.s32.totalorder %s135, %s136
    %p148 = scmp.eq.s32.totalorder %s21, 1
    %p149 = por %p147, %p148
    %p151 = scmp.ne.s32.totalorder %s136, %s150
    %p152 = scmp.eq.s32.totalorder %s21, 0
    %p153 = por %p151, %p152
    %s155 = sadd.s32 %s154, 1
    %p158 = scmp.eq.s32.totalorder %s15, 1
    %p159 = scmp.ne.s32.totalorder %s154, %s156
    %p160 = scmp.eq.s32.totalorder %s15, 0
    %p161 = por %p159, %p160
    %p162 = scmp.ne.s32.totalorder %s154, %s156
    %p163 = scmp.eq.s32.totalorder %s20, 1
    %p164 = por %p162, %p163
    %p165 = scmp.ne.s32.totalorder %s156, %s157
    %p166 = scmp.eq.s32.totalorder %s20, 0
    %p167 = por %p165, %p166
    %p168 = scmp.ne.s32.totalorder %s156, %s157
    %p169 = scmp.eq.s32.totalorder %s21, 1
    %p170 = por %p168, %p169
    %p172 = scmp.ne.s32.totalorder %s157, %s171
    %p173 = scmp.eq.s32.totalorder %s21, 0
    %p174 = por %p172, %p173
    %s176 = sadd.s32 %s175, 1
    %p179 = scmp.eq.s32.totalorder %s15, 1
    %p180 = scmp.ne.s32.totalorder %s175, %s177
    %p181 = scmp.eq.s32.totalorder %s15, 0
    %p182 = por %p180, %p181
    %p183 = scmp.ne.s32.totalorder %s175, %s177
    %p184 = scmp.eq.s32.totalorder %s20, 1
    %p185 = por %p183, %p184
    %p186 = scmp.ne.s32.totalorder %s177, %s178
    %p187 = scmp.eq.s32.totalorder %s20, 0
    %p188 = por %p186, %p187
    %p189 = scmp.ne.s32.totalorder %s177, %s178
    %p190 = scmp.eq.s32.totalorder %s21, 1
    %p191 = por %p189, %p190
    %p193 = scmp.ne.s32.totalorder %s178, %s192
    %p194 = scmp.eq.s32.totalorder %s21, 0
    %p195 = por %p193, %p194
    %s197 = sadd.s32 %s196, 1
    %p200 = scmp.eq.s32.totalorder %s15, 1
    %p201 = scmp.ne.s32.totalorder %s196, %s198
    %p202 = scmp.eq.s32.totalorder %s15, 0
    %p203 = por %p201, %p202
    %p204 = scmp.ne.s32.totalorder %s196, %s198
    %p205 = scmp.eq.s32.totalorder %s20, 1
    %p206 = por %p204, %p205
    %p207 = scmp.ne.s32.totalorder %s198, %s199
    %p208 = scmp.eq.s32.totalorder %s20, 0
    %p209 = por %p207, %p208
    %p210 = scmp.ne.s32.totalorder %s198, %s199
    %p211 = scmp.eq.s32.totalorder %s21, 1
    %p212 = por %p210, %p211
    %p214 = scmp.ne.s32.totalorder %s199, %s213
    %p215 = scmp.eq.s32.totalorder %s21, 0
    %p216 = por %p214, %p215
    %s217 = ssub.s32 %s15, %s22
    %p218 = scmp.eq.s32.totalorder %s217, 0
    %s220 = sadd.s32 %s219, 1
    %s221 = scalar_select %p218, %s219, %s220
    %p224 = pneg %p218
    %p225 = scmp.eq.s32.totalorder %s15, 1
    %p226 = por %p224, %p225
    %p227 = scmp.ne.s32.totalorder %s219, %s222
    %p228 = scmp.eq.s32.totalorder %s15, 0
    %p229 = por %p227, %p228
    %p230 = scmp.ne.s32.totalorder %s219, %s222
    %p231 = scmp.eq.s32.totalorder %s20, 1
    %p232 = por %p230, %p231
    %p233 = scmp.ne.s32.totalorder %s222, %s223
    %p234 = scmp.eq.s32.totalorder %s20, 0
    %p235 = por %p233, %p234
    %p236 = scmp.ne.s32.totalorder %s222, %s223
    %p237 = scmp.eq.s32.totalorder %s21, 1
    %p238 = por %p236, %p237
    %p240 = scmp.ne.s32.totalorder %s223, %s239
    %p241 = scmp.eq.s32.totalorder %s21, 0
    %p242 = por %p240, %p241
    %p243 = scmp.le.s32.totalorder 1, %s15
    %p244 = scmp.lt.s32.totalorder %s15, 3
    %p245 = pnand %p243, %p244
    %p246 = pneg %p245
    // Predicated region
    $region9: #{cgn_forward.1} parent=5 // pred_check
      _
    $region10: #{cgn_forward.1} parent=5 // pred_check_branch
      %248 = sbr.rel (%p245) target = $region12
    $region11: #{cgn_forward.1} parent=5 // pred_region
      %s249 = ssub.s32 %s15, 1
      // Predicated region
      $region13: #{cgn_forward.1} parent=11 // pred_check
        %p250 = pneg %p62
      $region14: #{cgn_forward.1} parent=11 // pred_check_branch
        %252 = sbr.rel (%p250) target = $region16
      $region15: #{cgn_forward.1} parent=11 // pred_region
        _
      $region16: #{cgn_forward.1} parent=11 // pred_fallthru
        _
      // Predicated region
      $region17: #{cgn_forward.1} parent=11 // pred_check
        %p253 = pneg %p83
      $region18: #{cgn_forward.1} parent=11 // pred_check_branch
        %255 = sbr.rel (%p253) target = $region20
      $region19: #{cgn_forward.1} parent=11 // pred_region
        _
      $region20: #{cgn_forward.1} parent=11 // pred_fallthru
        _
      // Predicated region
      $region21: #{cgn_forward.1} parent=11 // pred_check
        %p256 = pneg %p104
      $region22: #{cgn_forward.1} parent=11 // pred_check_branch
        %258 = sbr.rel (%p256) target = $region24
      $region23: #{cgn_forward.1} parent=11 // pred_region
        _
      $region24: #{cgn_forward.1} parent=11 // pred_fallthru
        _
      // Predicated region
      $region25: #{cgn_forward.1} parent=11 // pred_check
        %p259 = pneg %p125
      $region26: #{cgn_forward.1} parent=11 // pred_check_branch
        %261 = sbr.rel (%p259) target = $region28
      $region27: #{cgn_forward.1} parent=11 // pred_region
        _
      $region28: #{cgn_forward.1} parent=11 // pred_fallthru
        _
      // Predicated region
      $region29: #{cgn_forward.1} parent=11 // pred_check
        %p262 = pneg %p146
      $region30: #{cgn_forward.1} parent=11 // pred_check_branch
        %264 = sbr.rel (%p262) target = $region32
      $region31: #{cgn_forward.1} parent=11 // pred_region
        _
      $region32: #{cgn_forward.1} parent=11 // pred_fallthru
        _
      // Predicated region
      $region33: #{cgn_forward.1} parent=11 // pred_check
        %p265 = pneg %p167
      $region34: #{cgn_forward.1} parent=11 // pred_check_branch
        %267 = sbr.rel (%p265) target = $region36
      $region35: #{cgn_forward.1} parent=11 // pred_region
        _
      $region36: #{cgn_forward.1} parent=11 // pred_fallthru
        _
      // Predicated region
      $region37: #{cgn_forward.1} parent=11 // pred_check
        %p268 = pneg %p188
      $region38: #{cgn_forward.1} parent=11 // pred_check_branch
        %270 = sbr.rel (%p268) target = $region40
      $region39: #{cgn_forward.1} parent=11 // pred_region
        _
      $region40: #{cgn_forward.1} parent=11 // pred_fallthru
        _
      // Predicated region
      $region41: #{cgn_forward.1} parent=11 // pred_check
        %p271 = pneg %p209
      $region42: #{cgn_forward.1} parent=11 // pred_check_branch
        %273 = sbr.rel (%p271) target = $region44
      $region43: #{cgn_forward.1} parent=11 // pred_region
        _
      $region44: #{cgn_forward.1} parent=11 // pred_fallthru
        _
    $region12: #{cgn_forward.1} parent=5 // pred_fallthru
      _
    %p274 = scmp.lt.s32.totalorder %s15, 2
    // Predicated region
    $region45: #{cgn_forward.1} parent=5 // pred_check
      %p275 = pneg %p274
    $region46: #{cgn_forward.1} parent=5 // pred_check_branch
      %277 = sbr.rel (%p275) target = $region48
    $region47: #{cgn_forward.1} parent=5 // pred_region
      // Predicated region
      $region49: #{cgn_forward.1} parent=47 // pred_check
        %p278 = pneg %p35
      $region50: #{cgn_forward.1} parent=47 // pred_check_branch
        %280 = sbr.rel (%p278) target = $region52
      $region51: #{cgn_forward.1} parent=47 // pred_region
        %s281 = smul.u32 5, %s15
        %p282 = scmp.lt.s32.totalorder %s281, 9
        %s283 = scalar_select %p282, %s281, 9
        %s284 = smul.addr %s283, 8
        %s285 = scalar_lea.vmem %s0, %s284
        %s286 = smul.u32 5, %s15
      $region52: #{cgn_forward.1} parent=47 // pred_fallthru
        _
    $region48: #{cgn_forward.1} parent=5 // pred_fallthru
      _
    %p287 = scmp.le.s32.totalorder 1, %s15
    %p288 = scmp.lt.s32.totalorder %s15, 3
    %p289 = pnand %p287, %p288
    %p290 = pneg %p289
    // Predicated region
    $region53: #{cgn_forward.1} parent=5 // pred_check
      _
    $region54: #{cgn_forward.1} parent=5 // pred_check_branch
      %292 = sbr.rel (%p289) target = $region56
    $region55: #{cgn_forward.1} parent=5 // pred_region
      %s293 = ssub.s32 %s15, 1
      %s294 = smul.u32 5, %s20
      %p295 = scmp.lt.s32.totalorder %s294, 9
      %s296 = scalar_select %p295, %s294, 9
      %s297 = smul.addr %s296, 8
      %s298 = scalar_lea.vmem %s0, %s297
      %p299 = pneg %p41
      %p300 = pneg %p38
      %p301 = pneg %p62
      %p302 = pneg %p59
      %p303 = pneg %p83
      %p304 = pneg %p80
      %p305 = pneg %p104
      %p306 = pneg %p101
      %p307 = pneg %p125
      %p308 = pneg %p122
      %p309 = pneg %p146
      %p310 = pneg %p143
      %p311 = pneg %p167
      %p312 = pneg %p164
      %p313 = pneg %p188
      %p314 = pneg %p185
      %p315 = pneg %p209
      %p316 = pneg %p206
      %p317 = pneg %p235
      %p318 = pneg %p232
      %s319 = smul.u32 5, %s20
      %p320 = scmp.lt.s32.totalorder %s319, 9
      %s321 = scalar_select %p320, %s319, 9
      %s322 = smul.addr %s321, 2
      %s323 = smul.addr %s322, 8
      %s324 = scalar_lea.vmem %s9, %s323
      %s325 = smul.u32 5, %s20
      %p326 = scmp.lt.s32.totalorder %s325, 9
      %s327 = scalar_select %p326, %s325, 9
      %s328 = smul.addr %s327, 8
      %s329 = scalar_lea.vmem %s0, %s328
      %s330 = smul.u32 5, %s20
      %s331 = smul.u32 5, %s20
      %p332 = scmp.lt.s32.totalorder %s331, 9
      %s333 = scalar_select %p332, %s331, 9
      %s334 = smul.addr %s333, 2
      %s335 = smul.addr %s334, 8
      %s336 = scalar_lea.vmem %s9, %s335
      %s337 = smul.u32 5, %s20
      %v338 = vld [vmem:[%s329] sm:$0xff]
      %v339 = vld [vmem:[%s329 + $0x8] sm:$0xff]
      %v340 = vld [vmem:[%s329 + $0x10] sm:$0xff]
      %v341 = vld [vmem:[%s329 + $0x18] sm:$0xff]
      %v342 = vld [vmem:[%s329 + $0x20] sm:$0xff]
      %v343 = vld [vmem:[%s1] sm:$0x7]
      %v344 = vld [vmem:[%s2] sm:$0x1]
      %v346 = vlaneseq
      %v347 = vshrl.u32 %v346, 7
      %v348 = vsub.s32 0, %v347
      %v349 = vrot.slane %v344, %v348
      %vm351 = vcmask 23552
      %v353 = vsel %vm351, %v338, 0
      %v356 = vsel %vm351, %v339, 0
      %v359 = vsel %vm351, %v340, 0
      %v362 = vsel %vm351, %v341, 0
      %v365 = vsel %vm351, %v342, 0
      %vm367 = vcmask 1042432
      %v369 = vsel %vm367, %v343, 0
      %371 = vmatprep.subr.mxu0 0.0
      %372 = vmatpush1.msra.mxu0 %v369
      %373 = vmatprep.subr.mxu0 0.0
      %374 = vmatpush1.msra.mxu0 0.0
      %375 = vmatprep.subr.mxu0 0.0
      %376 = vmatpush1.msra.mxu0 0.0
      %377 = vmatprep.subr.mxu0 0.0
      %378 = vmatpush1.msra.mxu0 0.0
      %379 = vmatprep.subr.mxu0 0.0
      %380 = vmatpush1.msra.mxu0 0.0
      %381 = vmatprep.subr.mxu0 0.0
      %382 = vmatpush1.msra.mxu0 0.0
      %383 = vmatprep.subr.mxu0 0.0
      %384 = vmatpush1.msra.mxu0 0.0
      %385 = vmatprep.subr.mxu0 0.0
      %386 = vmatpush1.msra.mxu0 0.0
      %387 = vmatprep.subr.mxu0 0.0
      %388 = vmatpush1.msra.mxu0 0.0
      %389 = vmatprep.subr.mxu0 0.0
      %390 = vmatpush1.msra.mxu0 0.0
      %391 = vmatprep.subr.mxu0 0.0
      %392 = vmatpush1.msra.mxu0 0.0
      %393 = vmatprep.subr.mxu0 0.0
      %394 = vmatpush1.msra.mxu0 0.0
      %395 = vmatprep.subr.mxu0 0.0
      %396 = vmatpush1.msra.mxu0 0.0
      %397 = vmatprep.subr.mxu0 0.0
      %398 = vmatpush1.msra.mxu0 0.0
      %399 = vmatprep.subr.mxu0 0.0
      %400 = vmatpush1.msra.mxu0 0.0
      %401 = vmatprep.subr.mxu0 0.0
      %402 = vmatpush1.msra.mxu0 0.0
      %403 = vmatprep.subr.mxu0 0.0
      %404 = vmatpush1.msra.mxu0 0.0
      %405 = vmatprep.subr.mxu0 0.0
      %406 = vmatpush1.msra.mxu0 0.0
      %407 = vmatprep.subr.mxu0 0.0
      %408 = vmatpush1.msra.mxu0 0.0
      %409 = vmatprep.subr.mxu0 0.0
      %410 = vmatpush1.msra.mxu0 0.0
      %411 = vmatprep.subr.mxu0 0.0
      %412 = vmatpush1.msra.mxu0 0.0
      %413 = vmatprep.subr.mxu0 0.0
      %414 = vmatpush1.msra.mxu0 0.0
      %415 = vmatprep.subr.mxu0 0.0
      %416 = vmatpush1.msra.mxu0 0.0
      %417 = vmatprep.subr.mxu0 0.0
      %418 = vmatpush1.msra.mxu0 0.0
      %419 = vmatprep.subr.mxu0 0.0
      %420 = vmatpush1.msra.mxu0 0.0
      %421 = vmatprep.subr.mxu0 0.0
      %422 = vmatpush1.msra.mxu0 0.0
      %423 = vmatprep.subr.mxu0 0.0
      %424 = vmatpush1.msra.mxu0 0.0
      %425 = vmatprep.subr.mxu0 0.0
      %426 = vmatpush1.msra.mxu0 0.0
      %427 = vmatprep.subr.mxu0 0.0
      %428 = vmatpush1.msra.mxu0 0.0
      %429 = vmatprep.subr.mxu0 0.0
      %430 = vmatpush1.msra.mxu0 0.0
      %431 = vmatprep.subr.mxu0 0.0
      %432 = vmatpush1.msra.mxu0 0.0
      %433 = vmatprep.subr.mxu0 0.0
      %434 = vmatpush1.msra.mxu0 0.0
      %435 = vmatprep.mubr.f32.mxu0 0.0
      %436 = vmatmul.mubr.f32.gmra.mrb[0].mxu0 %v353
      %v437 = vpop.f32.mrb[0].mxu0
      %v438 = vadd.f32 %v349, %v437
      %v439 = vpop.f32.mrb[0].mxu0
      %440 = vmatprep.mubr.f32.mxu0 0.0
      %441 = vmatmul.mubr.f32.gmra.mrb[0].mxu0 %v356
      %v442 = vpop.f32.mrb[0].mxu0
      %v443 = vadd.f32 %v349, %v442
      %v444 = vpop.f32.mrb[0].mxu0
      %445 = vmatprep.mubr.f32.mxu0 0.0
      %446 = vmatmul.mubr.f32.gmra.mrb[0].mxu0 %v359
      %v447 = vpop.f32.mrb[0].mxu0
      %v448 = vadd.f32 %v349, %v447
      %v449 = vpop.f32.mrb[0].mxu0
      %450 = vmatprep.mubr.f32.mxu0 0.0
      %451 = vmatmul.mubr.f32.gmra.mrb[0].mxu0 %v362
      %v452 = vpop.f32.mrb[0].mxu0
      %v453 = vadd.f32 %v349, %v452
      %v454 = vpop.f32.mrb[0].mxu0
      %455 = vmatprep.mubr.f32.mxu0 0.0
      %456 = vmatmul.mubr.f32.gmra.mrb[0].mxu0 %v365
      %v457 = vpop.f32.mrb[0].mxu0
      %v458 = vadd.f32 %v349, %v457
      %v459 = vpop.f32.mrb[0].mxu0
      %460 = vdwg.mxu0
      %v461 = vmax.f32 %v438, 0.0
      %v462 = vmax.f32 %v443, 0.0
      %v463 = vmax.f32 %v448, 0.0
      %v464 = vmax.f32 %v453, 0.0
      %v465 = vmax.f32 %v458, 0.0
      %v466 = vld [vmem:[%s3] sm:$0xff]
      %v467 = vld [vmem:[%s3 + $0x8] sm:$0xff]
      %v468 = vld [vmem:[%s3 + $0x10] sm:$0xff]
      %v469 = vld [vmem:[%s3 + $0x18] sm:$0xff]
      %v470 = vld [vmem:[%s4] sm:$0x1]
      %v472 = vlaneseq
      %v473 = vshrl.u32 %v472, 7
      %v474 = vsub.s32 0, %v473
      %v475 = vrot.slane %v470, %v474
      %vm477 = vcmask 261120
      %v479 = vsel %vm477, %v461, 0
      %v482 = vsel %vm477, %v462, 0
      %v485 = vsel %vm477, %v463, 0
      %v488 = vsel %vm477, %v464, 0
      %v491 = vsel %vm477, %v465, 0
      %493 = vmatprep.subr.mxu0 0.0
      %494 = vmatpush1.msra.mxu0 %v466
      %495 = vmatprep.subr.mxu0 0.0
      %496 = vmatpush1.msra.mxu0 %v467
      %497 = vmatprep.subr.mxu0 0.0
      %498 = vmatpush1.msra.mxu0 %v468
      %499 = vmatprep.subr.mxu0 0.0
      %500 = vmatpush1.msra.mxu0 %v469
      %501 = vmatprep.subr.mxu0 0.0
      %502 = vmatpush1.msra.mxu0 0.0
      %503 = vmatprep.subr.mxu0 0.0
      %504 = vmatpush1.msra.mxu0 0.0
      %505 = vmatprep.subr.mxu0 0.0
      %506 = vmatpush1.msra.mxu0 0.0
      %507 = vmatprep.subr.mxu0 0.0
      %508 = vmatpush1.msra.mxu0 0.0
      %509 = vmatprep.subr.mxu0 0.0
      %510 = vmatpush1.msra.mxu0 0.0
      %511 = vmatprep.subr.mxu0 0.0
      %512 = vmatpush1.msra.mxu0 0.0
      %513 = vmatprep.subr.mxu0 0.0
      %514 = vmatpush1.msra.mxu0 0.0
      %515 = vmatprep.subr.mxu0 0.0
      %516 = vmatpush1.msra.mxu0 0.0
      %517 = vmatprep.subr.mxu0 0.0
      %518 = vmatpush1.msra.mxu0 0.0
      %519 = vmatprep.subr.mxu0 0.0
      %520 = vmatpush1.msra.mxu0 0.0
      %521 = vmatprep.subr.mxu0 0.0
      %522 = vmatpush1.msra.mxu0 0.0
      %523 = vmatprep.subr.mxu0 0.0
      %524 = vmatpush1.msra.mxu0 0.0
      %525 = vmatprep.subr.mxu0 0.0
      %526 = vmatpush1.msra.mxu0 0.0
      %527 = vmatprep.subr.mxu0 0.0
      %528 = vmatpush1.msra.mxu0 0.0
      %529 = vmatprep.subr.mxu0 0.0
      %530 = vmatpush1.msra.mxu0 0.0
      %531 = vmatprep.subr.mxu0 0.0
      %532 = vmatpush1.msra.mxu0 0.0
      %533 = vmatprep.subr.mxu0 0.0
      %534 = vmatpush1.msra.mxu0 0.0
      %535 = vmatprep.subr.mxu0 0.0
      %536 = vmatpush1.msra.mxu0 0.0
      %537 = vmatprep.subr.mxu0 0.0
      %538 = vmatpush1.msra.mxu0 0.0
      %539 = vmatprep.subr.mxu0 0.0
      %540 = vmatpush1.msra.mxu0 0.0
      %541 = vmatprep.subr.mxu0 0.0
      %542 = vmatpush1.msra.mxu0 0.0
      %543 = vmatprep.subr.mxu0 0.0
      %544 = vmatpush1.msra.mxu0 0.0
      %545 = vmatprep.subr.mxu0 0.0
      %546 = vmatpush1.msra.mxu0 0.0
      %547 = vmatprep.subr.mxu0 0.0
      %548 = vmatpush1.msra.mxu0 0.0
      %549 = vmatprep.subr.mxu0 0.0
      %550 = vmatpush1.msra.mxu0 0.0
      %551 = vmatprep.subr.mxu0 0.0
      %552 = vmatpush1.msra.mxu0 0.0
      %553 = vmatprep.subr.mxu0 0.0
      %554 = vmatpush1.msra.mxu0 0.0
      %555 = vmatprep.subr.mxu0 0.0
      %556 = vmatpush1.msra.mxu0 0.0
      %557 = vmatprep.mubr.f32.mxu0 0.0
      %558 = vmatmul.mubr.f32.gmra.mrb[0].mxu0 %v479
      %v559 = vpop.f32.mrb[0].mxu0
      %v560 = vadd.f32 %v475, %v559
      %v561 = vpop.f32.mrb[0].mxu0
      %562 = vmatprep.mubr.f32.mxu0 0.0
      %563 = vmatmul.mubr.f32.gmra.mrb[0].mxu0 %v482
      %v564 = vpop.f32.mrb[0].mxu0
      %v565 = vadd.f32 %v475, %v564
      %v566 = vpop.f32.mrb[0].mxu0
      %567 = vmatprep.mubr.f32.mxu0 0.0
      %568 = vmatmul.mubr.f32.gmra.mrb[0].mxu0 %v485
      %v569 = vpop.f32.mrb[0].mxu0
      %v570 = vadd.f32 %v475, %v569
      %v571 = vpop.f32.mrb[0].mxu0
      %572 = vmatprep.mubr.f32.mxu0 0.0
      %573 = vmatmul.mubr.f32.gmra.mrb[0].mxu0 %v488
      %v574 = vpop.f32.mrb[0].mxu0
      %v575 = vadd.f32 %v475, %v574
      %v576 = vpop.f32.mrb[0].mxu0
      %577 = vmatprep.mubr.f32.mxu0 0.0
      %578 = vmatmul.mubr.f32.gmra.mrb[0].mxu0 %v491
      %v579 = vpop.f32.mrb[0].mxu0
      %v580 = vadd.f32 %v475, %v579
      %v581 = vpop.f32.mrb[0].mxu0
      %582 = vdwg.mxu0
      %v583 = vmax.f32 %v560, 0.0
      %v584 = vmax.f32 %v565, 0.0
      %v585 = vmax.f32 %v570, 0.0
      %v586 = vmax.f32 %v575, 0.0
      %v587 = vmax.f32 %v580, 0.0
      %v588 = vld [vmem:[%s5] sm:$0xff]
      %v589 = vld [vmem:[%s5 + $0x8] sm:$0xff]
      %v590 = vld [vmem:[%s5 + $0x10] sm:$0xff]
      %v591 = vld [vmem:[%s5 + $0x18] sm:$0xff]
      %v592 = vld [vmem:[%s5 + $0x20] sm:$0xff]
      %v593 = vld [vmem:[%s5 + $0x28] sm:$0xff]
      %v594 = vld [vmem:[%s5 + $0x30] sm:$0xff]
      %v595 = vld [vmem:[%s5 + $0x38] sm:$0xff]
      %v596 = vld [vmem:[%s6] sm:$0x1]
      %v598 = vlaneseq
      %v599 = vshrl.u32 %v598, 7
      %v600 = vsub.s32 0, %v599
      %v601 = vrot.slane %v596, %v600
      %vm603 = vcmask 523264
      %v605 = vsel %vm603, %v583, 0
      %v608 = vsel %vm603, %v584, 0
      %v611 = vsel %vm603, %v585, 0
      %v614 = vsel %vm603, %v586, 0
      %v617 = vsel %vm603, %v587, 0
      %619 = vmatprep.subr.mxu0 0.0
      %620 = vmatpush1.msra.mxu0 %v588
      %621 = vmatprep.subr.mxu0 0.0
      %622 = vmatpush1.msra.mxu0 %v589
      %623 = vmatprep.subr.mxu0 0.0
      %624 = vmatpush1.msra.mxu0 %v590
      %625 = vmatprep.subr.mxu0 0.0
      %626 = vmatpush1.msra.mxu0 %v591
      %627 = vmatprep.subr.mxu0 0.0
      %628 = vmatpush1.msra.mxu0 %v592
      %629 = vmatprep.subr.mxu0 0.0
      %630 = vmatpush1.msra.mxu0 %v593
      %631 = vmatprep.subr.mxu0 0.0
      %632 = vmatpush1.msra.mxu0 %v594
      %633 = vmatprep.subr.mxu0 0.0
      %634 = vmatpush1.msra.mxu0 %v595
      %635 = vmatprep.subr.mxu0 0.0
      %636 = vmatpush1.msra.mxu0 0.0
      %637 = vmatprep.subr.mxu0 0.0
      %638 = vmatpush1.msra.mxu0 0.0
      %639 = vmatprep.subr.mxu0 0.0
      %640 = vmatpush1.msra.mxu0 0.0
      %641 = vmatprep.subr.mxu0 0.0
      %642 = vmatpush1.msra.mxu0 0.0
      %643 = vmatprep.subr.mxu0 0.0
      %644 = vmatpush1.msra.mxu0 0.0
      %645 = vmatprep.subr.mxu0 0.0
      %646 = vmatpush1.msra.mxu0 0.0
      %647 = vmatprep.subr.mxu0 0.0
      %648 = vmatpush1.msra.mxu0 0.0
      %649 = vmatprep.subr.mxu0 0.0
      %650 = vmatpush1.msra.mxu0 0.0
      %651 = vmatprep.subr.mxu0 0.0
      %652 = vmatpush1.msra.mxu0 0.0
      %653 = vmatprep.subr.mxu0 0.0
      %654 = vmatpush1.msra.mxu0 0.0
      %655 = vmatprep.subr.mxu0 0.0
      %656 = vmatpush1.msra.mxu0 0.0
      %657 = vmatprep.subr.mxu0 0.0
      %658 = vmatpush1.msra.mxu0 0.0
      %659 = vmatprep.subr.mxu0 0.0
      %660 = vmatpush1.msra.mxu0 0.0
      %661 = vmatprep.subr.mxu0 0.0
      %662 = vmatpush1.msra.mxu0 0.0
      %663 = vmatprep.subr.mxu0 0.0
      %664 = vmatpush1.msra.mxu0 0.0
      %665 = vmatprep.subr.mxu0 0.0
      %666 = vmatpush1.msra.mxu0 0.0
      %667 = vmatprep.subr.mxu0 0.0
      %668 = vmatpush1.msra.mxu0 0.0
      %669 = vmatprep.subr.mxu0 0.0
      %670 = vmatpush1.msra.mxu0 0.0
      %671 = vmatprep.subr.mxu0 0.0
      %672 = vmatpush1.msra.mxu0 0.0
      %673 = vmatprep.subr.mxu0 0.0
      %674 = vmatpush1.msra.mxu0 0.0
      %675 = vmatprep.subr.mxu0 0.0
      %676 = vmatpush1.msra.mxu0 0.0
      %677 = vmatprep.subr.mxu0 0.0
      %678 = vmatpush1.msra.mxu0 0.0
      %679 = vmatprep.subr.mxu0 0.0
      %680 = vmatpush1.msra.mxu0 0.0
      %681 = vmatprep.subr.mxu0 0.0
      %682 = vmatpush1.msra.mxu0 0.0
      %683 = vmatprep.mubr.f32.mxu0 0.0
      %684 = vmatmul.mubr.f32.gmra.mrb[0].mxu0 %v605
      %v685 = vpop.f32.mrb[0].mxu0
      %v686 = vadd.f32 %v601, %v685
      %v687 = vpop.f32.mrb[0].mxu0
      %688 = vmatprep.mubr.f32.mxu0 0.0
      %689 = vmatmul.mubr.f32.gmra.mrb[0].mxu0 %v608
      %v690 = vpop.f32.mrb[0].mxu0
      %v691 = vadd.f32 %v601, %v690
      %v692 = vpop.f32.mrb[0].mxu0
      %693 = vmatprep.mubr.f32.mxu0 0.0
      %694 = vmatmul.mubr.f32.gmra.mrb[0].mxu0 %v611
      %v695 = vpop.f32.mrb[0].mxu0
      %v696 = vadd.f32 %v601, %v695
      %v697 = vpop.f32.mrb[0].mxu0
      %698 = vmatprep.mubr.f32.mxu0 0.0
      %699 = vmatmul.mubr.f32.gmra.mrb[0].mxu0 %v614
      %v700 = vpop.f32.mrb[0].mxu0
      %v701 = vadd.f32 %v601, %v700
      %v702 = vpop.f32.mrb[0].mxu0
      %703 = vmatprep.mubr.f32.mxu0 0.0
      %704 = vmatmul.mubr.f32.gmra.mrb[0].mxu0 %v617
      %v705 = vpop.f32.mrb[0].mxu0
      %v706 = vadd.f32 %v601, %v705
      %v707 = vpop.f32.mrb[0].mxu0
      %708 = vdwg.mxu0
      %v709 = vmax.f32 %v686, 0.0
      %v710 = vmax.f32 %v691, 0.0
      %v711 = vmax.f32 %v696, 0.0
      %v712 = vmax.f32 %v701, 0.0
      %v713 = vmax.f32 %v706, 0.0
      %v714 = vld [vmem:[%s7] sm:$0xff]
      %v715 = vld [vmem:[%s7 + $0x8] sm:$0xff]
      %v716 = vld [vmem:[%s7 + $0x10] sm:$0xff]
      %v717 = vld [vmem:[%s7 + $0x18] sm:$0xff]
      %v718 = vld [vmem:[%s7 + $0x20] sm:$0xff]
      %v719 = vld [vmem:[%s7 + $0x28] sm:$0xff]
      %v720 = vld [vmem:[%s7 + $0x30] sm:$0xff]
      %v721 = vld [vmem:[%s7 + $0x38] sm:$0xff]
      %v722 = vld [vmem:[%s8] sm:$0x3]
      %v724 = vlaneseq
      %v725 = vshrl.u32 %v724, 7
      %v726 = vsub.s32 0, %v725
      %v727 = vrot.slane %v722, %v726
      %v728 = vlaneseq
      %v729 = vshrl.u32 %v728, 7
      %v730 = vsub.s32 1, %v729
      %v731 = vrot.slane %v722, %v730
      %v735 = vsel %vm477, %v709, 0
      %v738 = vsel %vm477, %v710, 0
      %v741 = vsel %vm477, %v711, 0
      %v744 = vsel %vm477, %v712, 0
      %v747 = vsel %vm477, %v713, 0
      %749 = vmatprep.subr.mxu0 %v715
      %750 = vmatpush1.msra.mxu0 %v714
      %751 = vmatprep.subr.mxu0 %v717
      %752 = vmatpush1.msra.mxu0 %v716
      %753 = vmatprep.subr.mxu0 %v719
      %754 = vmatpush1.msra.mxu0 %v718
      %755 = vmatprep.subr.mxu0 %v721
      %756 = vmatpush1.msra.mxu0 %v720
      %757 = vmatprep.subr.mxu0 0.0
      %758 = vmatpush1.msra.mxu0 0.0
      %759 = vmatprep.subr.mxu0 0.0
      %760 = vmatpush1.msra.mxu0 0.0
      %761 = vmatprep.subr.mxu0 0.0
      %762 = vmatpush1.msra.mxu0 0.0
      %763 = vmatprep.subr.mxu0 0.0
      %764 = vmatpush1.msra.mxu0 0.0
      %765 = vmatprep.subr.mxu0 0.0
      %766 = vmatpush1.msra.mxu0 0.0
      %767 = vmatprep.subr.mxu0 0.0
      %768 = vmatpush1.msra.mxu0 0.0
      %769 = vmatprep.subr.mxu0 0.0
      %770 = vmatpush1.msra.mxu0 0.0
      %771 = vmatprep.subr.mxu0 0.0
      %772 = vmatpush1.msra.mxu0 0.0
      %773 = vmatprep.subr.mxu0 0.0
      %774 = vmatpush1.msra.mxu0 0.0
      %775 = vmatprep.subr.mxu0 0.0
      %776 = vmatpush1.msra.mxu0 0.0
      %777 = vmatprep.subr.mxu0 0.0
      %778 = vmatpush1.msra.mxu0 0.0
      %779 = vmatprep.subr.mxu0 0.0
      %780 = vmatpush1.msra.mxu0 0.0
      %781 = vmatprep.subr.mxu0 0.0
      %782 = vmatpush1.msra.mxu0 0.0
      %783 = vmatprep.subr.mxu0 0.0
      %784 = vmatpush1.msra.mxu0 0.0
      %785 = vmatprep.subr.mxu0 0.0
      %786 = vmatpush1.msra.mxu0 0.0
      %787 = vmatprep.subr.mxu0 0.0
      %788 = vmatpush1.msra.mxu0 0.0
      %789 = vmatprep.subr.mxu0 0.0
      %790 = vmatpush1.msra.mxu0 0.0
      %791 = vmatprep.subr.mxu0 0.0
      %792 = vmatpush1.msra.mxu0 0.0
      %793 = vmatprep.subr.mxu0 0.0
      %794 = vmatpush1.msra.mxu0 0.0
      %795 = vmatprep.subr.mxu0 0.0
      %796 = vmatpush1.msra.mxu0 0.0
      %797 = vmatprep.subr.mxu0 0.0
      %798 = vmatpush1.msra.mxu0 0.0
      %799 = vmatprep.subr.mxu0 0.0
      %800 = vmatpush1.msra.mxu0 0.0
      %801 = vmatprep.subr.mxu0 0.0
      %802 = vmatpush1.msra.mxu0 0.0
      %803 = vmatprep.subr.mxu0 0.0
      %804 = vmatpush1.msra.mxu0 0.0
      %805 = vmatprep.subr.mxu0 0.0
      %806 = vmatpush1.msra.mxu0 0.0
      %807 = vmatprep.subr.mxu0 0.0
      %808 = vmatpush1.msra.mxu0 0.0
      %809 = vmatprep.subr.mxu0 0.0
      %810 = vmatpush1.msra.mxu0 0.0
      %811 = vmatprep.subr.mxu0 0.0
      %812 = vmatpush1.msra.mxu0 0.0
      %813 = vmatprep.mubr.f32.mxu0 0.0
      %814 = vmatmul.mubr.f32.gmra.mrb[0].mxu0 %v735
      %v815 = vpop.f32.mrb[0].mxu0
      %v816 = vadd.f32 %v727, %v815
      %v817 = vpop.f32.mrb[0].mxu0
      %v818 = vadd.f32 %v731, %v817
      %819 = vmatprep.mubr.f32.mxu0 0.0
      %820 = vmatmul.mubr.f32.gmra.mrb[0].mxu0 %v738
      %v821 = vpop.f32.mrb[0].mxu0
      %v822 = vadd.f32 %v727, %v821
      %v823 = vpop.f32.mrb[0].mxu0
      %v824 = vadd.f32 %v731, %v823
      %825 = vmatprep.mubr.f32.mxu0 0.0
      %826 = vmatmul.mubr.f32.gmra.mrb[0].mxu0 %v741
      %v827 = vpop.f32.mrb[0].mxu0
      %v828 = vadd.f32 %v727, %v827
      %v829 = vpop.f32.mrb[0].mxu0
      %v830 = vadd.f32 %v731, %v829
      %831 = vmatprep.mubr.f32.mxu0 0.0
      %832 = vmatmul.mubr.f32.gmra.mrb[0].mxu0 %v744
      %v833 = vpop.f32.mrb[0].mxu0
      %v834 = vadd.f32 %v727, %v833
      %v835 = vpop.f32.mrb[0].mxu0
      %v836 = vadd.f32 %v731, %v835
      %837 = vmatprep.mubr.f32.mxu0 0.0
      %838 = vmatmul.mubr.f32.gmra.mrb[0].mxu0 %v747
      %v839 = vpop.f32.mrb[0].mxu0
      %v840 = vadd.f32 %v727, %v839
      %v841 = vpop.f32.mrb[0].mxu0
      %v842 = vadd.f32 %v731, %v841
      %843 = vdwg.mxu0
      %844 = vst [vmem:[%s336] sm:$0xff] %v816
      %845 = vst [vmem:[%s336 + $0x8] sm:$0xff] %v818
      %846 = vst [vmem:[%s336 + $0x10] sm:$0xff] %v822
      %847 = vst [vmem:[%s336 + $0x18] sm:$0xff] %v824
      %848 = vst [vmem:[%s336 + $0x20] sm:$0xff] %v828
      %849 = vst [vmem:[%s336 + $0x28] sm:$0xff] %v830
      %850 = vst [vmem:[%s336 + $0x30] sm:$0xff] %v834
      %851 = vst [vmem:[%s336 + $0x38] sm:$0xff] %v836
      %852 = vst [vmem:[%s336 + $0x40] sm:$0xff] %v840
      %853 = vst [vmem:[%s336 + $0x48] sm:$0xff] %v842
      %s854 = smul.u32 5, %s20
      %p855 = scmp.lt.s32.totalorder %s854, 9
      %s856 = scalar_select %p855, %s854, 9
      %s857 = smul.addr %s856, 2
      %s858 = smul.addr %s857, 8
      %s859 = scalar_lea.vmem %s9, %s858
      // Predicated region
      $region57: #{cgn_forward.1} parent=55 // pred_check
        %p860 = pneg %p232
      $region58: #{cgn_forward.1} parent=55 // pred_check_branch
        %862 = sbr.rel (%p860) target = $region60
      $region59: #{cgn_forward.1} parent=55 // pred_region
        %s863 = smul.u32 5, %s20
      $region60: #{cgn_forward.1} parent=55 // pred_fallthru
        _
    $region56: #{cgn_forward.1} parent=5 // pred_fallthru
      _
    %p864 = scmp.le.s32.totalorder 2, %s15
    // Predicated region
    $region61: #{cgn_forward.1} parent=5 // pred_check
      %p865 = pneg %p864
    $region62: #{cgn_forward.1} parent=5 // pred_check_branch
      %867 = sbr.rel (%p865) target = $region64
    $region63: #{cgn_forward.1} parent=5 // pred_region
      %s868 = ssub.s32 %s15, 2
      // Predicated region
      $region65: #{cgn_forward.1} parent=63 // pred_check
        %p869 = pneg %p238
      $region66: #{cgn_forward.1} parent=63 // pred_check_branch
        %871 = sbr.rel (%p869) target = $region68
      $region67: #{cgn_forward.1} parent=63 // pred_region
        %s872 = smul.u32 5, %s21
        %p873 = scmp.lt.s32.totalorder %s872, 9
        %s874 = scalar_select %p873, %s872, 9
        %s875 = smul.addr %s874, 2
        %s876 = smul.addr %s875, 8
        %s877 = scalar_lea.vmem %s9, %s876
      $region68: #{cgn_forward.1} parent=63 // pred_fallthru
        _
    $region64: #{cgn_forward.1} parent=5 // pred_fallthru
      _
  $region6: #{cgn_forward.1} parent=0 // loop_footer
    %s19 = sadd.s32 1, %s15
  $region7: #{cgn_forward.1} parent=0 // loop_footer_branch
    %14 = sbr.rel target = $region3
  $region8: #{cgn_forward.1} parent=0 // loop_exit
    _

</llo_original>
